<compile_context>
chip_gen: v7x
topology: tpu7x:2x2x1
jax: 0.10.0
libtpu: 0.0.40
codegen_flags: <defaults>
</compile_context>

<pallas_src>
import functools

import jax
import jax.numpy as jnp
from jax.experimental import pallas as pl
from jax.experimental.pallas import tpu as pltpu

_MiB = 1024 * 1024


def _round_up(x: int, m: int) -> int:
    return ((x + m - 1) // m) * m


def _enn_epilogue(logits, *, out_dim: int, n_pad: int, pack: bool):
    """ELU -> exp -> L1-normalize(evidence + 1). Returns the output tile(s)."""
    # All elementwise math stays f32 (v5e has no bf16 VPU/EUP path).
    elu = jnp.where(logits > 0, logits, jnp.exp(logits) - 1.0)  # ELU, alpha=1
    # NOTE: like the PyTorch reference, evidence = exp(ELU(logits)) overflows
    # to +inf for very large logits.
    evidence = jnp.exp(elu)
    alpha = evidence + 1.0
    col = None
    if pack or n_pad != out_dim:
        col = jax.lax.broadcasted_iota(jnp.int32, alpha.shape, 1)
    if n_pad != out_dim:
        alpha = jnp.where(col < out_dim, alpha, 0.0)  # exclude padded lanes
    denom = jnp.sum(alpha, axis=1, keepdims=True)
    prob = alpha * pl.reciprocal(denom, approx=True)  # EUP vrcp
    if pack:
        # Pack both outputs into one lane-dense 128-wide slab:
        #   evidence -> lanes [0, 64), prob -> lanes [64, 128).
        # shift == n_pad // 2 (== 64) so the roll direction is immaterial.
        half = n_pad // 2
        packed = jnp.where(col < half, evidence,
                           pltpu.roll(prob, shift=half, axis=1))
        return (packed,)
    return (evidence, prob)


def _enn_kernel_fused(x_ref, w_ref, b_ref, *out_refs, out_dim, n_pad, pack,
                      mxu_dtype):
    # Single reduction step: no K axis, no accumulator scratch, no pl.when.
    # x is cast to the MXU dtype on the VPU here (hidden under MXU/DMA) so the
    # HBM-side x stays f32 and needs no wrapper cast pass.
    x = x_ref[...].astype(mxu_dtype)
    logits = jnp.dot(x, w_ref[...],
                     preferred_element_type=jnp.float32) + b_ref[...]
    outs = _enn_epilogue(logits, out_dim=out_dim, n_pad=n_pad, pack=pack)
    for ref, val in zip(out_refs, outs):
        ref[...] = val.astype(ref.dtype)


def _enn_kernel_ksplit(x_ref, w_ref, b_ref, *refs, out_dim, n_pad, pack,
                       mxu_dtype):
    # refs = (*out_refs, acc_scratch)
    out_refs, acc_ref = refs[:-1], refs[-1]
    k = pl.program_id(1)

    @pl.when(k == 0)
    def _init():
        # Fold the bias into the accumulator init (no extra add in epilogue).
        acc_ref[...] = jnp.broadcast_to(b_ref[...], acc_ref.shape)

    x = x_ref[...].astype(mxu_dtype)
    acc_ref[...] += jnp.dot(x, w_ref[...], preferred_element_type=jnp.float32)

    @pl.when(k == pl.num_programs(1) - 1)
    def _finalize():
        outs = _enn_epilogue(acc_ref[...], out_dim=out_dim, n_pad=n_pad,
                             pack=pack)
        for ref, val in zip(out_refs, outs):
            ref[...] = val.astype(ref.dtype)


def linear_enn_forward(x, w, b, *, tb=None, out_dtype=jnp.float32,
                       use_bf16_matmul=True):
    """Pallas implementation of LinearEnn.forward.

    Args:
      x: [B, in_dim] float32 activations (kept f32 in HBM; cast in-kernel).
      w: [in_dim, out_dim] float32 weight (transpose of PyTorch layout).
      b: [out_dim] float32 bias.
      tb: optional batch tile (rows); auto-derived if None.
      out_dtype: dtype of (evidence, prob); jnp.bfloat16 halves writeback
        (recommended on v5e) if downstream tolerates it.
      use_bf16_matmul: cast x/W to bf16 for the MXU (f32 accumulation). Set
        False for accuracy-sensitive callers (exp amplifies logit error).
    Returns:
      (evidence, prob): both [B, out_dim] out_dtype.
    """
    B, in_dim = x.shape
    in_dim_w, out_dim = w.shape
    assert in_dim_w == in_dim and b.shape == (out_dim,)

    mxu_dtype = jnp.bfloat16 if use_bf16_matmul else jnp.float32
    mxu_bytes = jnp.dtype(mxu_dtype).itemsize
    out_bytes = jnp.dtype(out_dtype).itemsize
    x_bytes = jnp.dtype(x.dtype).itemsize

    # Lane-dense output width; pack both outputs into one 128-wide slab when
    # they fit (out_dim <= 64) to halve HBM writeback.
    n_pad = _round_up(out_dim, 128)
    pack = out_dim <= (n_pad // 2)
    n_out = 1 if pack else 2

    # ---- Generation-aware VMEM budgeting --------------------------------
    try:
        vmem_cap = int(pltpu.get_tpu_info().vmem_capacity_bytes)
    except Exception:
        vmem_cap = 64 * _MiB  # conservative: v7x per-TensorCore
    # ~24 MiB tiling budget on 64 MiB parts (v7x), ~56 MiB on 128 MiB parts.
    budget = max(24 * _MiB, vmem_cap // 2 - 8 * _MiB)

    def vmem_estimate(tb_, tk_, nk_):
        x_b = 2 * tb_ * tk_ * x_bytes                 # double-buffered x tile
        w_b = (1 if nk_ == 1 else 2) * tk_ * n_pad * mxu_bytes  # Buffered(1) resident
        b_b = n_pad * 4
        o_b = n_out * 2 * tb_ * n_pad * out_bytes     # double-buffered outputs
        a_b = (tb_ * n_pad * 4) if nk_ > 1 else 0     # f32 acc scratch
        return x_b + w_b + b_b + o_b + a_b

    # ---- Batch tile: aim for >= 8 grid steps (>= 4 per core on v7x) ------
    B8 = _round_up(max(B, 1), 8)
    if tb is None:
        tb = min(512, max(8, _round_up(pl.cdiv(B8, 8), 8)))
    tb = max(8, min(_round_up(int(tb), 8), B8))
    min_tb = min(128, B8)

    # ---- Choose fused (full-K, W resident) vs K-split path ---------------
    tk, in_dim_p, nk = in_dim, in_dim, 1
    if vmem_estimate(tb, in_dim, 1) > budget:
        # Shrink tb (but not below ~128 rows) before giving up W residency...
        tb_try = tb
        while tb_try > min_tb and vmem_estimate(tb_try, in_dim, 1) > budget:
            tb_try = max(min_tb, _round_up(tb_try // 2, 8))
        if vmem_estimate(tb_try, in_dim, 1) <= budget:
            tb = tb_try
        else:
            # ...then split K, keeping tb large so the pipeline stays deep.
            tk = 512
            while tk > 128 and vmem_estimate(tb, tk, 2) > budget:
                tk //= 2
            while tb > min_tb and vmem_estimate(tb, tk, 2) > budget:
                tb = max(min_tb, _round_up(tb // 2, 8))
            in_dim_p = _round_up(in_dim, tk)
            nk = in_dim_p // tk
            if nk == 1:               # small in_dim after all -> fused path
                tk, in_dim_p = in_dim, in_dim

    # Prefer a batch tile dividing B8 (avoids a wrapper pad pass over x).
    tb_div = next((c for c in range(tb, 7, -8) if B8 % c == 0), 8)
    if tb_div >= max(8, tb // 4):
        tb = tb_div
        B_pad = B8
    else:
        B_pad = _round_up(B, tb)
    grid_b = B_pad // tb

    est = vmem_estimate(tb, tk, nk)
    vmem_limit = int(min(3 * vmem_cap // 4, max(2 * est, 32 * _MiB)))

    # ---- Operand prep (W/b need the lane/K padding pass regardless; x is
    # only padded when the batch tile does not divide B or K is split). -----
    # TODO(synk): if weights are static across calls, pad/cast W,b once at init.
    w_k = w.astype(mxu_dtype)
    if in_dim_p != in_dim or n_pad != out_dim:
        w_k = jnp.pad(w_k, ((0, in_dim_p - in_dim), (0, n_pad - out_dim)))
    b_k = b.astype(jnp.float32).reshape(1, out_dim)
    if n_pad != out_dim:
        b_k = jnp.pad(b_k, ((0, 0), (0, n_pad - out_dim)))
    x_k = x
    if B_pad != B or in_dim_p != in_dim:
        x_k = jnp.pad(x_k, ((0, B_pad - B), (0, in_dim_p - in_dim)))

    def _call(resident_single_buffer: bool):
        def _resident(shape, index_map):
            # Constant index_map => the tile is fetched once; request a single
            # buffer so VMEM is not charged twice for the resident weight.
            if resident_single_buffer and hasattr(pl, "Buffered"):
                return pl.BlockSpec(shape, index_map,
                                    pipeline_mode=pl.Buffered(1))
            return pl.BlockSpec(shape, index_map)

        if nk == 1:
            kernel = functools.partial(_enn_kernel_fused, out_dim=out_dim,
                                       n_pad=n_pad, pack=pack,
                                       mxu_dtype=mxu_dtype)
            grid = (grid_b,)
            in_specs = (
                pl.BlockSpec((tb, in_dim), lambda i: (i, 0)),
                _resident((in_dim, n_pad), lambda i: (0, 0)),
                _resident((1, n_pad), lambda i: (0, 0)),
            )
            out_specs = tuple(pl.BlockSpec((tb, n_pad), lambda i: (i, 0))
                              for _ in range(n_out))
            scratch_shapes = []
            dim_sem = ("parallel",)
        else:
            kernel = functools.partial(_enn_kernel_ksplit, out_dim=out_dim,
                                       n_pad=n_pad, pack=pack,
                                       mxu_dtype=mxu_dtype)
            grid = (grid_b, nk)
            in_specs = (
                pl.BlockSpec((tb, tk), lambda i, k: (i, k)),
                pl.BlockSpec((tk, n_pad), lambda i, k: (k, 0)),
                _resident((1, n_pad), lambda i, k: (0, 0)),
            )
            out_specs = tuple(pl.BlockSpec((tb, n_pad), lambda i, k: (i, 0))
                              for _ in range(n_out))
            scratch_shapes = [pltpu.VMEM((tb, n_pad), jnp.float32)]
            dim_sem = ("parallel", "arbitrary")

        return pl.pallas_call(
            kernel,
            out_shape=tuple(jax.ShapeDtypeStruct((B_pad, n_pad), out_dtype)
                            for _ in range(n_out)),
            grid=grid,
            in_specs=in_specs,
            out_specs=out_specs,
            scratch_shapes=scratch_shapes,
            compiler_params=pltpu.CompilerParams(
                dimension_semantics=dim_sem,
                vmem_limit_bytes=vmem_limit,
            ),
        )(x_k, w_k, b_k)

    try:
        outs = _call(True)
    except Exception:
        # Fallback: installed JAX rejects pipeline_mode / Buffered(1); use
        # default double-buffering for the resident W / bias.
        outs = _call(False)

    # ---- Strip padding / unpack ------------------------------------------
    if pack:
        half = n_pad // 2
        packed = outs[0]
        evidence = packed[:B, :out_dim]
        prob = packed[:B, half:half + out_dim]
    else:
        evidence = outs[0][:B, :out_dim]
        prob = outs[1][:B, :out_dim]
    return evidence, prob


def _reference_forward(x, w, b):
    logits = x @ w + b[None, :]
    elu = jnp.where(logits > 0, logits, jnp.exp(logits) - 1.0)
    evidence = jnp.exp(elu)
    alpha = evidence + 1.0
    prob = alpha / jnp.sum(alpha, axis=1, keepdims=True)
    return evidence, prob


if __name__ == "__main__":
    # Small shapes consistent with the module (linear ENN classifier head);
    # batch large enough to exercise the tiled multi-step grid (8 steps).
    B, IN_DIM, OUT_DIM = 256, 32, 8

    key = jax.random.PRNGKey(0)
    kx, kw, kb = jax.random.split(key, 3)

    # Deterministic parameter init (PyTorch-Linear-style uniform bound).
    bound = 1.0 / jnp.sqrt(jnp.float32(IN_DIM))
    x = jax.random.normal(kx, (B, IN_DIM), dtype=jnp.float32)
    w = jax.random.uniform(kw, (IN_DIM, OUT_DIM), dtype=jnp.float32,
                           minval=-bound, maxval=bound)
    b = jax.random.uniform(kb, (OUT_DIM,), dtype=jnp.float32,
                           minval=-bound, maxval=bound)

    evidence, prob = linear_enn_forward(x, w, b)
    evidence = jax.block_until_ready(evidence)
    prob = jax.block_until_ready(prob)

    ev_ref, prob_ref = _reference_forward(x, w, b)
    assert evidence.shape == (B, OUT_DIM) and prob.shape == (B, OUT_DIM)
    # Tolerances account for bf16 MXU operands + approx EUP reciprocal.
    assert jnp.allclose(evidence, ev_ref, rtol=3e-2, atol=3e-2), \
        float(jnp.max(jnp.abs(evidence - ev_ref)))
    assert jnp.allclose(prob, prob_ref, rtol=3e-2, atol=3e-2), \
        float(jnp.max(jnp.abs(prob - prob_ref)))
    assert jnp.allclose(jnp.sum(prob, axis=1), 1.0, atol=5e-3)

    # TODO(synk): criterion() (digamma/Dirichlet KL loss) and predict()
    # uncertainty are training/eval utilities, not part of forward().

    print("KERNEL_OK")
</pallas_src>

<mosaic_0001>
module attributes {stable_mosaic.version = 11 : i64} {
  func.func @_enn_kernel_fused(%arg0: i32, %arg1: memref<32x32xf32, #tpu.memory_space<vmem>>, %arg2: memref<32x128xbf16, #tpu.memory_space<vmem>>, %arg3: memref<1x128xf32, #tpu.memory_space<vmem>>, %arg4: memref<32x128xf32, #tpu.memory_space<vmem>>) attributes {dimension_semantics = [#tpu.dimension_semantics<parallel>], iteration_bounds = array<i64: 8>, scalar_prefetch = 0 : i64, scratch_operands = 0 : i64, tpu.core_type = #tpu.core_type<tc>, window_params = [{transform_indices = @transform_0, window_bounds = array<i64: 32, 32>}, {pipeline_mode = #tpu.pipeline_mode<synchronous>, transform_indices = @transform_1, window_bounds = array<i64: 32, 128>}, {pipeline_mode = #tpu.pipeline_mode<synchronous>, transform_indices = @transform_2, window_bounds = array<i64: 1, 128>}, {transform_indices = @transform_3, window_bounds = array<i64: 32, 128>}]} {
    %c0 = arith.constant 0 : index
    %c0_0 = arith.constant 0 : index
    %0 = vector.load %arg1[%c0, %c0_0] : memref<32x32xf32, #tpu.memory_space<vmem>>, vector<32x32xf32>
    %1 = arith.truncf %0 : vector<32x32xf32> to vector<32x32xbf16>
    %c0_1 = arith.constant 0 : index
    %c0_2 = arith.constant 0 : index
    %2 = vector.load %arg2[%c0_1, %c0_2] : memref<32x128xbf16, #tpu.memory_space<vmem>>, vector<32x128xbf16>
    %cst = arith.constant dense<0.000000e+00> : vector<32x128xf32>
    %3 = tpu.matmul %1, %2, %cst {dimension_numbers = #tpu.dot_dimension_numbers<[1], [0], [0], [1], [0, 0, 1, 1], [], []>} : vector<32x32xbf16>, vector<32x128xbf16>, vector<32x128xf32> -> vector<32x128xf32>
    %c0_3 = arith.constant 0 : index
    %c0_4 = arith.constant 0 : index
    %4 = vector.load %arg3[%c0_3, %c0_4] : memref<1x128xf32, #tpu.memory_space<vmem>>, vector<1x128xf32>
    %5 = vector.broadcast %4 : vector<1x128xf32> to vector<32x128xf32>
    %6 = arith.addf %3, %5 : vector<32x128xf32>
    %cst_5 = arith.constant 0.000000e+00 : f32
    %7 = vector.broadcast %cst_5 : f32 to vector<32x128xf32>
    %8 = arith.cmpf ogt, %6, %7 : vector<32x128xf32>
    %9 = math.exp %6 : vector<32x128xf32>
    %cst_6 = arith.constant 1.000000e+00 : f32
    %10 = vector.broadcast %cst_6 : f32 to vector<32x128xf32>
    %11 = arith.subf %9, %10 : vector<32x128xf32>
    %12 = arith.select %8, %6, %11 : vector<32x128xi1>, vector<32x128xf32>
    %13 = math.exp %12 : vector<32x128xf32>
    %cst_7 = arith.constant 1.000000e+00 : f32
    %14 = vector.broadcast %cst_7 : f32 to vector<32x128xf32>
    %15 = arith.addf %13, %14 : vector<32x128xf32>
    %16 = tpu.iota {dimensions = array<i32: 1>} : vector<32x128xi32>
    %c8_i32 = arith.constant 8 : i32
    %17 = vector.broadcast %c8_i32 : i32 to vector<32x128xi32>
    %18 = arith.cmpi slt, %16, %17 : vector<32x128xi32>
    %cst_8 = arith.constant 0.000000e+00 : f32
    %19 = vector.broadcast %cst_8 : f32 to vector<32x128xf32>
    %20 = arith.select %18, %15, %19 : vector<32x128xi1>, vector<32x128xf32>
    %cst_9 = arith.constant dense<0.000000e+00> : vector<32xf32>
    %21 = vector.multi_reduction <add>, %20, %cst_9 [1] : vector<32x128xf32> to vector<32xf32>
    %22 = vector.shape_cast %21 : vector<32xf32> to vector<32x1xf32>
    %23 = tpu.reciprocal %22 {approx = true} : vector<32x1xf32> -> vector<32x1xf32>
    %24 = vector.broadcast %23 : vector<32x1xf32> to vector<32x128xf32>
    %25 = arith.mulf %20, %24 : vector<32x128xf32>
    %c64_i32 = arith.constant 64 : i32
    %26 = vector.broadcast %c64_i32 : i32 to vector<32x128xi32>
    %27 = arith.cmpi slt, %16, %26 : vector<32x128xi32>
    %c64_i32_10 = arith.constant 64 : i32
    %28 = tpu.dynamic_rotate %25 by %c64_i32_10 dim 1 : vector<32x128xf32>, i32 -> vector<32x128xf32>
    %29 = arith.select %27, %13, %28 : vector<32x128xi1>, vector<32x128xf32>
    %c0_11 = arith.constant 0 : index
    %c0_12 = arith.constant 0 : index
    %30 = vector.load %arg4[%c0_11, %c0_12] : memref<32x128xf32, #tpu.memory_space<vmem>>, vector<32x128xf32>
    tpu.vector_store %arg4[%c0_11, %c0_12], %29 {strides = array<i32>} : memref<32x128xf32, #tpu.memory_space<vmem>>, vector<32x128xf32>,
    return
  }
  func.func @transform_0(%arg0: i32) -> (i32, i32) {
    %c0_i32 = arith.constant 0 : i32
    %c0_i32_0 = arith.constant 0 : i32
    return %arg0, %c0_i32 : i32, i32
  }
  func.func @transform_1(%arg0: i32) -> (i32, i32) {
    %c0_i32 = arith.constant 0 : i32
    %c0_i32_0 = arith.constant 0 : i32
    %c0_i32_1 = arith.constant 0 : i32
    return %c0_i32, %c0_i32_0 : i32, i32
  }
  func.func @transform_2(%arg0: i32) -> (i32, i32) {
    %c0_i32 = arith.constant 0 : i32
    %c0_i32_0 = arith.constant 0 : i32
    %c0_i32_1 = arith.constant 0 : i32
    return %c0_i32, %c0_i32_0 : i32, i32
  }
  func.func @transform_3(%arg0: i32) -> (i32, i32) {
    %c0_i32 = arith.constant 0 : i32
    %c0_i32_0 = arith.constant 0 : i32
    return %arg0, %c0_i32 : i32, i32
  }
}

module attributes {stable_mosaic.version = 11 : i64} {
  func.func @_enn_kernel_fused(%arg0: i32, %arg1: memref<32x32xf32, #tpu.memory_space<vmem>>, %arg2: memref<32x128xbf16, #tpu.memory_space<vmem>>, %arg3: memref<1x128xf32, #tpu.memory_space<vmem>>, %arg4: memref<32x128xf32, #tpu.memory_space<vmem>>) attributes {dimension_semantics = [#tpu.dimension_semantics<parallel>], iteration_bounds = array<i64: 8>, scalar_prefetch = 0 : i64, scratch_operands = 0 : i64, tpu.core_type = #tpu.core_type<tc>, window_params = [{transform_indices = @transform_0, window_bounds = array<i64: 32, 32>}, {pipeline_mode = #tpu.pipeline_mode<synchronous>, transform_indices = @transform_1, window_bounds = array<i64: 32, 128>}, {pipeline_mode = #tpu.pipeline_mode<synchronous>, transform_indices = @transform_2, window_bounds = array<i64: 1, 128>}, {transform_indices = @transform_3, window_bounds = array<i64: 32, 128>}]} {
    %c0 = arith.constant 0 : index
    %c0_0 = arith.constant 0 : index
    %0 = vector.load %arg1[%c0, %c0_0] : memref<32x32xf32, #tpu.memory_space<vmem>>, vector<32x32xf32>
    %1 = arith.truncf %0 : vector<32x32xf32> to vector<32x32xbf16>
    %c0_1 = arith.constant 0 : index
    %c0_2 = arith.constant 0 : index
    %2 = vector.load %arg2[%c0_1, %c0_2] : memref<32x128xbf16, #tpu.memory_space<vmem>>, vector<32x128xbf16>
    %cst = arith.constant dense<0.000000e+00> : vector<32x128xf32>
    %3 = tpu.matmul %1, %2, %cst {dimension_numbers = #tpu.dot_dimension_numbers<[1], [0], [0], [1], [0, 0, 1, 1], [], []>} : vector<32x32xbf16>, vector<32x128xbf16>, vector<32x128xf32> -> vector<32x128xf32>
    %c0_3 = arith.constant 0 : index
    %c0_4 = arith.constant 0 : index
    %4 = vector.load %arg3[%c0_3, %c0_4] : memref<1x128xf32, #tpu.memory_space<vmem>>, vector<1x128xf32>
    %5 = vector.broadcast %4 : vector<1x128xf32> to vector<32x128xf32>
    %6 = arith.addf %3, %5 : vector<32x128xf32>
    %cst_5 = arith.constant 0.000000e+00 : f32
    %7 = vector.broadcast %cst_5 : f32 to vector<32x128xf32>
    %8 = arith.cmpf ogt, %6, %7 : vector<32x128xf32>
    %9 = math.exp %6 : vector<32x128xf32>
    %cst_6 = arith.constant 1.000000e+00 : f32
    %10 = vector.broadcast %cst_6 : f32 to vector<32x128xf32>
    %11 = arith.subf %9, %10 : vector<32x128xf32>
    %12 = arith.select %8, %6, %11 : vector<32x128xi1>, vector<32x128xf32>
    %13 = math.exp %12 : vector<32x128xf32>
    %cst_7 = arith.constant 1.000000e+00 : f32
    %14 = vector.broadcast %cst_7 : f32 to vector<32x128xf32>
    %15 = arith.addf %13, %14 : vector<32x128xf32>
    %16 = tpu.iota {dimensions = array<i32: 1>} : vector<32x128xi32>
    %c8_i32 = arith.constant 8 : i32
    %17 = vector.broadcast %c8_i32 : i32 to vector<32x128xi32>
    %18 = arith.cmpi slt, %16, %17 : vector<32x128xi32>
    %cst_8 = arith.constant 0.000000e+00 : f32
    %19 = vector.broadcast %cst_8 : f32 to vector<32x128xf32>
    %20 = arith.select %18, %15, %19 : vector<32x128xi1>, vector<32x128xf32>
    %cst_9 = arith.constant dense<0.000000e+00> : vector<32xf32>
    %21 = vector.multi_reduction <add>, %20, %cst_9 [1] : vector<32x128xf32> to vector<32xf32>
    %22 = vector.shape_cast %21 : vector<32xf32> to vector<32x1xf32>
    %23 = tpu.reciprocal %22 {approx = true} : vector<32x1xf32> -> vector<32x1xf32>
    %24 = vector.broadcast %23 : vector<32x1xf32> to vector<32x128xf32>
    %25 = arith.mulf %20, %24 : vector<32x128xf32>
    %c64_i32 = arith.constant 64 : i32
    %26 = vector.broadcast %c64_i32 : i32 to vector<32x128xi32>
    %27 = arith.cmpi slt, %16, %26 : vector<32x128xi32>
    %c64_i32_10 = arith.constant 64 : i32
    %28 = tpu.dynamic_rotate %25 by %c64_i32_10 dim 1 : vector<32x128xf32>, i32 -> vector<32x128xf32>
    %29 = arith.select %27, %13, %28 : vector<32x128xi1>, vector<32x128xf32>
    %c0_11 = arith.constant 0 : index
    %c0_12 = arith.constant 0 : index
    %30 = vector.load %arg4[%c0_11, %c0_12] : memref<32x128xf32, #tpu.memory_space<vmem>>, vector<32x128xf32>
    tpu.vector_store %arg4[%c0_11, %c0_12], %29 {strides = array<i32>} : memref<32x128xf32, #tpu.memory_space<vmem>>, vector<32x128xf32>,
    return
  }
  func.func @transform_0(%arg0: i32) -> (i32, i32) {
    %c0_i32 = arith.constant 0 : i32
    %c0_i32_0 = arith.constant 0 : i32
    return %arg0, %c0_i32 : i32, i32
  }
  func.func @transform_1(%arg0: i32) -> (i32, i32) {
    %c0_i32 = arith.constant 0 : i32
    %c0_i32_0 = arith.constant 0 : i32
    %c0_i32_1 = arith.constant 0 : i32
    return %c0_i32, %c0_i32_0 : i32, i32
  }
  func.func @transform_2(%arg0: i32) -> (i32, i32) {
    %c0_i32 = arith.constant 0 : i32
    %c0_i32_0 = arith.constant 0 : i32
    %c0_i32_1 = arith.constant 0 : i32
    return %c0_i32, %c0_i32_0 : i32, i32
  }
  func.func @transform_3(%arg0: i32) -> (i32, i32) {
    %c0_i32 = arith.constant 0 : i32
    %c0_i32_0 = arith.constant 0 : i32
    return %arg0, %c0_i32 : i32, i32
  }
}

</mosaic_0001>

<llo_original>
// kernel: tpu_custom_call.1
$region0: #{tpu_custom_call.1}
  #allocation0 [shape = 'u32[]', space=smem, size = 0x4, offset = 0x4, fixed_abs, tag = 'smem constant byte address 0x4 - core index']
  #allocation1 [shape = 'u32[144,128]{1,0:T(1,128)}', space=vmem, size = 0x12000, scoped, tag = 'internal scratch']
  %s0 = inlined_call_operand.vmem [shape: f32[256,32], index: 0, kind: input, shape index: {}]
  %s1 = inlined_call_operand.vmem [shape: bf16[32,128], index: 1, kind: input, shape index: {}]
  %s2 = inlined_call_operand.vmem [shape: f32[1,128], index: 2, kind: input, shape index: {}]
  %s3 = inlined_call_operand.hbm [shape: f32[256,128], index: 3, kind: output, shape index: {}]
  %s4 = sld [smem:[#allocation0]]
  $region45: #{tpu_custom_call.1} parent=0
    _
  %s6 = ssub.s32 1, %s4
  %s7 = scalar_select 0, %s6, %s4
  $region1: #{tpu_custom_call.1} parent=0
    #allocation2 [shape = 'u8[32768]{0}', space=vmem, size = 0x8000, scoped, tag = 'output window, operand 0']
    #allocation3 [shape = 's32[2]{0}', space=sflag, size = 0x8, scoped, tag = 'scoped memory for tpu_custom_call.1']
    %8 = vsyncpa [#allocation3], 0
    %s9 = scalar_lea.sflag [#allocation3], 1
    %10 = vsyncpa %s9, 0
    loop: start=0, step=1, limit=10
    $region2: #{tpu_custom_call.1} parent=1 // loop_pre_header
      _
    $region3: #{tpu_custom_call.1} parent=1 // loop_header
      %s12 = sphi 0, %s16
      %p13 = scmp.ge.s32.totalorder %s12, 10
      %s22 = sphi 0, %s24
      %s25 = sphi 0, %s22
      %s26 = sphi 0, %s25
      %s42 = sphi 0, %s26
      %s46 = sphi 0, %s46
      %s48 = sphi 0, %s46
      %s49 = sphi 0, %s48
      %s63 = sphi 0, %s49
      %s67 = sphi 0, %s67
      %s69 = sphi 0, %s67
      %s70 = sphi 0, %s69
      %s84 = sphi 0, %s70
      %s90 = sphi 0, %s92
      %s93 = sphi 0, %s90
      %s94 = sphi 0, %s93
      %s110 = sphi 0, %s94
    $region4: #{tpu_custom_call.1} parent=1 // loop_header_branch
      %15 = sbr.rel (%p13) target = $region8
    $region5: #{tpu_custom_call.1} parent=1 // loop_body
      %s17 = ssub.s32 %s12, 1
      %s18 = ssub.s32 %s12, 2
      %s19 = sadd.s32 %s12, 1
      %s20 = ssub.s32 %s12, %s19
      %p21 = scmp.eq.s32.totalorder %s20, 0
      %s23 = sadd.s32 %s22, 1
      %s24 = scalar_select %p21, %s22, %s23
      %p27 = pneg %p21
      %p28 = scmp.eq.s32.totalorder %s12, 7
      %p29 = por %p27, %p28
      %p30 = scmp.ne.s32.totalorder %s22, %s25
      %p31 = scmp.eq.s32.totalorder %s12, 0
      %p32 = por %p30, %p31
      %p33 = scmp.ne.s32.totalorder %s22, %s25
      %p34 = scmp.eq.s32.totalorder %s17, 7
      %p35 = por %p33, %p34
      %p36 = scmp.ne.s32.totalorder %s25, %s26
      %p37 = scmp.eq.s32.totalorder %s17, 0
      %p38 = por %p36, %p37
      %p39 = scmp.ne.s32.totalorder %s25, %s26
      %p40 = scmp.eq.s32.totalorder %s18, 7
      %p41 = por %p39, %p40
      %p43 = scmp.ne.s32.totalorder %s26, %s42
      %p44 = scmp.eq.s32.totalorder %s18, 0
      %p45 = por %p43, %p44
      %s47 = sadd.s32 %s46, 1
      %p50 = scmp.eq.s32.totalorder %s12, 7
      %p51 = scmp.ne.s32.totalorder %s46, %s48
      %p52 = scmp.eq.s32.totalorder %s12, 0
      %p53 = por %p51, %p52
      %p54 = scmp.ne.s32.totalorder %s46, %s48
      %p55 = scmp.eq.s32.totalorder %s17, 7
      %p56 = por %p54, %p55
      %p57 = scmp.ne.s32.totalorder %s48, %s49
      %p58 = scmp.eq.s32.totalorder %s17, 0
      %p59 = por %p57, %p58
      %p60 = scmp.ne.s32.totalorder %s48, %s49
      %p61 = scmp.eq.s32.totalorder %s18, 7
      %p62 = por %p60, %p61
      %p64 = scmp.ne.s32.totalorder %s49, %s63
      %p65 = scmp.eq.s32.totalorder %s18, 0
      %p66 = por %p64, %p65
      %s68 = sadd.s32 %s67, 1
      %p71 = scmp.eq.s32.totalorder %s12, 7
      %p72 = scmp.ne.s32.totalorder %s67, %s69
      %p73 = scmp.eq.s32.totalorder %s12, 0
      %p74 = por %p72, %p73
      %p75 = scmp.ne.s32.totalorder %s67, %s69
      %p76 = scmp.eq.s32.totalorder %s17, 7
      %p77 = por %p75, %p76
      %p78 = scmp.ne.s32.totalorder %s69, %s70
      %p79 = scmp.eq.s32.totalorder %s17, 0
      %p80 = por %p78, %p79
      %p81 = scmp.ne.s32.totalorder %s69, %s70
      %p82 = scmp.eq.s32.totalorder %s18, 7
      %p83 = por %p81, %p82
      %p85 = scmp.ne.s32.totalorder %s70, %s84
      %p86 = scmp.eq.s32.totalorder %s18, 0
      %p87 = por %p85, %p86
      %s88 = ssub.s32 %s12, %s19
      %p89 = scmp.eq.s32.totalorder %s88, 0
      %s91 = sadd.s32 %s90, 1
      %s92 = scalar_select %p89, %s90, %s91
      %p95 = pneg %p89
      %p96 = scmp.eq.s32.totalorder %s12, 7
      %p97 = por %p95, %p96
      %p98 = scmp.ne.s32.totalorder %s90, %s93
      %p99 = scmp.eq.s32.totalorder %s12, 0
      %p100 = por %p98, %p99
      %p101 = scmp.ne.s32.totalorder %s90, %s93
      %p102 = scmp.eq.s32.totalorder %s17, 7
      %p103 = por %p101, %p102
      %p104 = scmp.ne.s32.totalorder %s93, %s94
      %p105 = scmp.eq.s32.totalorder %s17, 0
      %p106 = por %p104, %p105
      %p107 = scmp.ne.s32.totalorder %s93, %s94
      %p108 = scmp.eq.s32.totalorder %s18, 7
      %p109 = por %p107, %p108
      %p111 = scmp.ne.s32.totalorder %s94, %s110
      %p112 = scmp.eq.s32.totalorder %s18, 0
      %p113 = por %p111, %p112
      %p114 = scmp.le.s32.totalorder 1, %s12
      %p115 = scmp.lt.s32.totalorder %s12, 9
      %p116 = pnand %p114, %p115
      %p117 = pneg %p116
      // Predicated region
      $region9: #{tpu_custom_call.1} parent=5 // pred_check
        _
      $region10: #{tpu_custom_call.1} parent=5 // pred_check_branch
        %119 = sbr.rel (%p116) target = $region12
      $region11: #{tpu_custom_call.1} parent=5 // pred_region
        %s120 = ssub.s32 %s12, 1
        // Predicated region
        $region13: #{tpu_custom_call.1} parent=11 // pred_check
          %p121 = pneg %p59
        $region14: #{tpu_custom_call.1} parent=11 // pred_check_branch
          %123 = sbr.rel (%p121) target = $region16
        $region15: #{tpu_custom_call.1} parent=11 // pred_region
          _
        $region16: #{tpu_custom_call.1} parent=11 // pred_fallthru
          _
        // Predicated region
        $region17: #{tpu_custom_call.1} parent=11 // pred_check
          %p124 = pneg %p80
        $region18: #{tpu_custom_call.1} parent=11 // pred_check_branch
          %126 = sbr.rel (%p124) target = $region20
        $region19: #{tpu_custom_call.1} parent=11 // pred_region
          _
        $region20: #{tpu_custom_call.1} parent=11 // pred_fallthru
          _
      $region12: #{tpu_custom_call.1} parent=5 // pred_fallthru
        _
      %p127 = scmp.lt.s32.totalorder %s12, 8
      // Predicated region
      $region21: #{tpu_custom_call.1} parent=5 // pred_check
        %p128 = pneg %p127
      $region22: #{tpu_custom_call.1} parent=5 // pred_check_branch
        %130 = sbr.rel (%p128) target = $region24
      $region23: #{tpu_custom_call.1} parent=5 // pred_region
        // Predicated region
        $region25: #{tpu_custom_call.1} parent=23 // pred_check
          %p131 = pneg %p32
        $region26: #{tpu_custom_call.1} parent=23 // pred_check_branch
          %133 = sbr.rel (%p131) target = $region28
        $region27: #{tpu_custom_call.1} parent=23 // pred_region
          %s134 = smul.u32 4, %s12
          %p135 = scmp.lt.s32.totalorder %s134, 31
          %s136 = scalar_select %p135, %s134, 31
          %s137 = smul.addr %s136, 8
          %s138 = scalar_lea.vmem %s0, %s137
          %s139 = smul.u32 4, %s12
        $region28: #{tpu_custom_call.1} parent=23 // pred_fallthru
          _
      $region24: #{tpu_custom_call.1} parent=5 // pred_fallthru
        _
      %p140 = scmp.le.s32.totalorder 1, %s12
      %p141 = scmp.lt.s32.totalorder %s12, 9
      %p142 = pnand %p140, %p141
      %p143 = pneg %p142
      // Predicated region
      $region29: #{tpu_custom_call.1} parent=5 // pred_check
        _
      $region30: #{tpu_custom_call.1} parent=5 // pred_check_branch
        %145 = sbr.rel (%p142) target = $region32
      $region31: #{tpu_custom_call.1} parent=5 // pred_region
        %s146 = ssub.s32 %s12, 1
        %s147 = smul.u32 4, %s17
        %p148 = scmp.lt.s32.totalorder %s147, 31
        %s149 = scalar_select %p148, %s147, 31
        %s150 = smul.addr %s149, 8
        %s151 = scalar_lea.vmem %s0, %s150
        %p152 = pneg %p38
        %p153 = pneg %p35
        %p154 = pneg %p59
        %p155 = pneg %p56
        %p156 = pneg %p80
        %p157 = pneg %p77
        %p158 = pneg %p106
        %p159 = pneg %p103
        %s160 = sand.u32 %s93, 1
        %s161 = scalar_lea.sflag [#allocation3], %s160
        %s162 = sand.u32 %s93, 1
        %s163 = smul.addr %s162, 32
        %s164 = scalar_lea.vmem [#allocation2], %s163
        %s165 = smul.u32 4, %s17
        %p166 = scmp.lt.s32.totalorder %s165, 31
        %s167 = scalar_select %p166, %s165, 31
        %s168 = smul.addr %s167, 8
        %s169 = scalar_lea.vmem %s0, %s168
        %s170 = smul.u32 4, %s17
        %s171 = smul.u32 4, %s17
        %v173 = vld [vmem:[%s169] sm:$0xff]
        %v174 = vld [vmem:[%s169 + $0x8] sm:$0xff]
        %v175 = vld [vmem:[%s169 + $0x10] sm:$0xff]
        %v176 = vld [vmem:[%s169 + $0x18] sm:$0xff]
        %v177 = vpack.c.bf16 %v174, %v173
        %v178 = vpack.c.bf16 %v176, %v175
        %v179 = vld [vmem:[%s1] sm:$0xf]
        %v180 = vld [vmem:[%s1 + $0x4] sm:$0xf]
        %v181 = vld [vmem:[%s1 + $0x8] sm:$0xf]
        %v182 = vld [vmem:[%s1 + $0xc] sm:$0xf]
        %v183 = vld [vmem:[%s2] sm:$0x1]
        %v185 = vlaneseq
        %v186 = vshrl.u32 %v185, 7
        %v187 = vsub.s32 0, %v186
        %v188 = vrot.slane %v183, %v187
        %v194 = vunpack.c.l.b16 %v179
        %v195 = vunpack.c.l.b16 %v180
        %v196 = vunpack.c.l.b16 %v181
        %v197 = vunpack.c.l.b16 %v182
        %v198 = vpack.c.b16 %v195, %v194
        %v199 = vpack.c.b16 %v197, %v196
        %vm202 = vcmask 261120
        %v204 = vsel %vm202, %v177, 0
        %v207 = vsel %vm202, %v178, 0
        %209 = vmatprep.subr.bf16.mxu0 0
        %210 = vmatpush1.bf16.msra.mxu0 %v198
        %211 = vmatprep.subr.bf16.mxu0 0
        %212 = vmatpush1.bf16.msra.mxu0 %v199
        %213 = vmatprep.subr.bf16.mxu0 0
        %214 = vmatpush1.bf16.msra.mxu0 0
        %215 = vmatprep.subr.bf16.mxu0 0
        %216 = vmatpush1.bf16.msra.mxu0 0
        %217 = vmatprep.subr.bf16.mxu0 0
        %218 = vmatpush1.bf16.msra.mxu0 0
        %219 = vmatprep.subr.bf16.mxu0 0
        %220 = vmatpush1.bf16.msra.mxu0 0
        %221 = vmatprep.subr.bf16.mxu0 0
        %222 = vmatpush1.bf16.msra.mxu0 0
        %223 = vmatprep.subr.bf16.mxu0 0
        %224 = vmatpush1.bf16.msra.mxu0 0
        %225 = vmatprep.subr.bf16.mxu0 0
        %226 = vmatpush1.bf16.msra.mxu0 0
        %227 = vmatprep.subr.bf16.mxu0 0
        %228 = vmatpush1.bf16.msra.mxu0 0
        %229 = vmatprep.subr.bf16.mxu0 0
        %230 = vmatpush1.bf16.msra.mxu0 0
        %231 = vmatprep.subr.bf16.mxu0 0
        %232 = vmatpush1.bf16.msra.mxu0 0
        %233 = vmatprep.subr.bf16.mxu0 0
        %234 = vmatpush1.bf16.msra.mxu0 0
        %235 = vmatprep.subr.bf16.mxu0 0
        %236 = vmatpush1.bf16.msra.mxu0 0
        %237 = vmatprep.subr.bf16.mxu0 0
        %238 = vmatpush1.bf16.msra.mxu0 0
        %239 = vmatprep.subr.bf16.mxu0 0
        %240 = vmatpush1.bf16.msra.mxu0 0
        %241 = vmatprep.mubr.bf16.mxu0 0
        %242 = vmatmul.mubr.bf16.gmra.mrb[0].mxu0 %v204
        %v243 = vpop.f32.mrb[0].mxu0
        %v244 = vadd.f32 %v188, %v243
        %v245 = vpop.f32.mrb[0].mxu0
        %v246 = vpop.f32.mrb[0].mxu0
        %v247 = vadd.f32 %v188, %v246
        %v248 = vpop.f32.mrb[0].mxu0
        %249 = vmatprep.mubr.bf16.mxu0 0
        %250 = vmatmul.mubr.bf16.gmra.mrb[0].mxu0 %v207
        %v251 = vpop.f32.mrb[0].mxu0
        %v252 = vadd.f32 %v188, %v251
        %v253 = vpop.f32.mrb[0].mxu0
        %v254 = vpop.f32.mrb[0].mxu0
        %v255 = vadd.f32 %v188, %v254
        %v256 = vpop.f32.mrb[0].mxu0
        %257 = vdwg.mxu0
        %vm258 = vcmp.gt.f32.partialorder %v244, 0.0
        %vm259 = vcmp.gt.f32.partialorder %v247, 0.0
        %vm260 = vcmp.gt.f32.partialorder %v252, 0.0
        %vm261 = vcmp.gt.f32.partialorder %v255, 0.0
        %v262 = vmul.f32 %v244, 1.442695
        %v263 = vpow.pop %v262
        %v264 = vmul.f32 %v247, 1.442695
        %v265 = vpow.pop %v264
        %v266 = vmul.f32 %v252, 1.442695
        %v267 = vpow.pop %v266
        %v268 = vmul.f32 %v255, 1.442695
        %v269 = vpow.pop %v268
        %v270 = vsub.f32 %v263, 1.0
        %v271 = vsub.f32 %v265, 1.0
        %v272 = vsub.f32 %v267, 1.0
        %v273 = vsub.f32 %v269, 1.0
        %v274 = vsel %vm258, %v244, %v270
        %v275 = vsel %vm259, %v247, %v271
        %v276 = vsel %vm260, %v252, %v272
        %v277 = vsel %vm261, %v255, %v273
        %v278 = vmul.f32 %v274, 1.442695
        %v279 = vpow.pop %v278
        %v280 = vmul.f32 %v275, 1.442695
        %v281 = vpow.pop %v280
        %v282 = vmul.f32 %v276, 1.442695
        %v283 = vpow.pop %v282
        %v284 = vmul.f32 %v277, 1.442695
        %v285 = vpow.pop %v284
        %v286 = vadd.f32 %v279, 1.0
        %v287 = vadd.f32 %v281, 1.0
        %v288 = vadd.f32 %v283, 1.0
        %v289 = vadd.f32 %v285, 1.0
        %v290 = vlaneseq
        %v291 = vand.u32 %v290, 127
        %vm292 = vcmp.lt.s32.totalorder %v291, 8
        %v293 = vsel %vm292, %v286, 0.0
        %v294 = vsel %vm292, %v287, 0.0
        %v295 = vsel %vm292, %v288, 0.0
        %v296 = vsel %vm292, %v289, 0.0
        %297 = vadd.xlane.f32.xlu0 %v293
        %v298 = vpop.xlane.xlu0 %297
        %299 = vadd.xlane.f32.xlu0 %v294
        %v300 = vpop.xlane.xlu0 %299
        %301 = vadd.xlane.f32.xlu0 %v295
        %v302 = vpop.xlane.xlu0 %301
        %303 = vadd.xlane.f32.xlu0 %v296
        %v304 = vpop.xlane.xlu0 %303
        %v305 = vrcp.pop %v298
        %v306 = vrcp.pop %v300
        %v307 = vrcp.pop %v302
        %v308 = vrcp.pop %v304
        %v309 = vmul.f32 %v293, %v305
        %v310 = vmul.f32 %v294, %v306
        %v311 = vmul.f32 %v295, %v307
        %v312 = vmul.f32 %v296, %v308
        %vm313 = vcmp.lt.s32.totalorder %v291, 64
        %314 = vrot.lane.b32.xlu0 %v309, 64
        %v315 = vpop.permute.xlu0 %314
        %316 = vrot.lane.b32.xlu0 %v310, 64
        %v317 = vpop.permute.xlu0 %316
        %318 = vrot.lane.b32.xlu0 %v311, 64
        %v319 = vpop.permute.xlu0 %318
        %320 = vrot.lane.b32.xlu0 %v312, 64
        %v321 = vpop.permute.xlu0 %320
        %v322 = vsel %vm313, %v279, %v315
        %v323 = vsel %vm313, %v281, %v317
        %v324 = vsel %vm313, %v283, %v319
        %v325 = vsel %vm313, %v285, %v321
        %326 = vst [vmem:[%s164] sm:$0xff] %v322
        %327 = vst [vmem:[%s164 + $0x8] sm:$0xff] %v323
        %328 = vst [vmem:[%s164 + $0x10] sm:$0xff] %v324
        %329 = vst [vmem:[%s164 + $0x18] sm:$0xff] %v325
        %s330 = sand.u32 %s93, 1
        %s331 = scalar_lea.sflag [#allocation3], %s330
        %s332 = sand.u32 %s93, 1
        %s333 = smul.addr %s332, 32
        %s334 = scalar_lea.vmem [#allocation2], %s333
        // Predicated region
        $region33: #{tpu_custom_call.1} parent=31 // pred_check
          %p335 = pneg %p103
        $region34: #{tpu_custom_call.1} parent=31 // pred_check_branch
          %337 = sbr.rel (%p335) target = $region36
        $region35: #{tpu_custom_call.1} parent=31 // pred_region
          %s338 = smul.u32 4, %s17
          %s340 = ssub.s32 512, 512
          %341 = vsyncadd %s331, %s340
          %s342 = smul.addr %s338, 128
          %s343 = scalar_lea.hbm %s3, %s342
          %s344 = sshll.u32 %s334, 4
          %s345 = int_to_ptr.vmem [resolvable:$true] %s344
          %350 = dma.vmem_to_hbm [thread:$0]  %s345, 512, %s343, %s331, 128, 128, 8
        $region36: #{tpu_custom_call.1} parent=31 // pred_fallthru
          _
      $region32: #{tpu_custom_call.1} parent=5 // pred_fallthru
        _
      %p351 = scmp.le.s32.totalorder 2, %s12
      // Predicated region
      $region37: #{tpu_custom_call.1} parent=5 // pred_check
        %p352 = pneg %p351
      $region38: #{tpu_custom_call.1} parent=5 // pred_check_branch
        %354 = sbr.rel (%p352) target = $region40
      $region39: #{tpu_custom_call.1} parent=5 // pred_region
        %s355 = ssub.s32 %s12, 2
        // Predicated region
        $region41: #{tpu_custom_call.1} parent=39 // pred_check
          %p356 = pneg %p109
        $region42: #{tpu_custom_call.1} parent=39 // pred_check_branch
          %358 = sbr.rel (%p356) target = $region44
        $region43: #{tpu_custom_call.1} parent=39 // pred_region
          %s359 = sand.u32 %s94, 1
          %s360 = scalar_lea.sflag [#allocation3], %s359
          %s361 = sand.u32 %s94, 1
          %s362 = smul.addr %s361, 32
          %s363 = scalar_lea.vmem [#allocation2], %s362
          %364 = dma.done %s360, 512
        $region44: #{tpu_custom_call.1} parent=39 // pred_fallthru
          _
      $region40: #{tpu_custom_call.1} parent=5 // pred_fallthru
        _
    $region6: #{tpu_custom_call.1} parent=1 // loop_footer
      %s16 = sadd.s32 1, %s12
    $region7: #{tpu_custom_call.1} parent=1 // loop_footer_branch
      %11 = sbr.rel target = $region3
    $region8: #{tpu_custom_call.1} parent=1 // loop_exit
      _
    %365 = vsyncpa [#allocation3], 1
    %s366 = scalar_lea.sflag [#allocation3], 1
    %367 = vsyncpa %s366, 1

// kernel: tpu_custom_call.1
$region0: #{tpu_custom_call.1}
  #allocation0 [shape = 'u32[]', space=smem, size = 0x4, offset = 0x4, fixed_abs, tag = 'smem constant byte address 0x4 - core index']
  #allocation1 [shape = 'u32[144,128]{1,0:T(1,128)}', space=vmem, size = 0x12000, scoped, tag = 'internal scratch']
  %s0 = inlined_call_operand.vmem [shape: f32[256,32], index: 0, kind: input, shape index: {}]
  %s1 = inlined_call_operand.vmem [shape: bf16[32,128], index: 1, kind: input, shape index: {}]
  %s2 = inlined_call_operand.vmem [shape: f32[1,128], index: 2, kind: input, shape index: {}]
  %s3 = inlined_call_operand.hbm [shape: f32[256,128], index: 3, kind: output, shape index: {}]
  %s4 = sld [smem:[#allocation0]]
  $region45: #{tpu_custom_call.1} parent=0
    _
  %s6 = ssub.s32 1, %s4
  %s7 = scalar_select 0, %s6, %s4
  $region1: #{tpu_custom_call.1} parent=0
    #allocation2 [shape = 'u8[32768]{0}', space=vmem, size = 0x8000, scoped, tag = 'output window, operand 0']
    #allocation3 [shape = 's32[2]{0}', space=sflag, size = 0x8, scoped, tag = 'scoped memory for tpu_custom_call.1']
    %8 = vsyncpa [#allocation3], 0
    %s9 = scalar_lea.sflag [#allocation3], 1
    %10 = vsyncpa %s9, 0
    loop: start=0, step=1, limit=10
    $region2: #{tpu_custom_call.1} parent=1 // loop_pre_header
      _
    $region3: #{tpu_custom_call.1} parent=1 // loop_header
      %s12 = sphi 0, %s16
      %p13 = scmp.ge.s32.totalorder %s12, 10
      %s22 = sphi 0, %s24
      %s25 = sphi 0, %s22
      %s26 = sphi 0, %s25
      %s42 = sphi 0, %s26
      %s46 = sphi 0, %s46
      %s48 = sphi 0, %s46
      %s49 = sphi 0, %s48
      %s63 = sphi 0, %s49
      %s67 = sphi 0, %s67
      %s69 = sphi 0, %s67
      %s70 = sphi 0, %s69
      %s84 = sphi 0, %s70
      %s90 = sphi 0, %s92
      %s93 = sphi 0, %s90
      %s94 = sphi 0, %s93
      %s110 = sphi 0, %s94
    $region4: #{tpu_custom_call.1} parent=1 // loop_header_branch
      %15 = sbr.rel (%p13) target = $region8
    $region5: #{tpu_custom_call.1} parent=1 // loop_body
      %s17 = ssub.s32 %s12, 1
      %s18 = ssub.s32 %s12, 2
      %s19 = sadd.s32 %s12, 1
      %s20 = ssub.s32 %s12, %s19
      %p21 = scmp.eq.s32.totalorder %s20, 0
      %s23 = sadd.s32 %s22, 1
      %s24 = scalar_select %p21, %s22, %s23
      %p27 = pneg %p21
      %p28 = scmp.eq.s32.totalorder %s12, 7
      %p29 = por %p27, %p28
      %p30 = scmp.ne.s32.totalorder %s22, %s25
      %p31 = scmp.eq.s32.totalorder %s12, 0
      %p32 = por %p30, %p31
      %p33 = scmp.ne.s32.totalorder %s22, %s25
      %p34 = scmp.eq.s32.totalorder %s17, 7
      %p35 = por %p33, %p34
      %p36 = scmp.ne.s32.totalorder %s25, %s26
      %p37 = scmp.eq.s32.totalorder %s17, 0
      %p38 = por %p36, %p37
      %p39 = scmp.ne.s32.totalorder %s25, %s26
      %p40 = scmp.eq.s32.totalorder %s18, 7
      %p41 = por %p39, %p40
      %p43 = scmp.ne.s32.totalorder %s26, %s42
      %p44 = scmp.eq.s32.totalorder %s18, 0
      %p45 = por %p43, %p44
      %s47 = sadd.s32 %s46, 1
      %p50 = scmp.eq.s32.totalorder %s12, 7
      %p51 = scmp.ne.s32.totalorder %s46, %s48
      %p52 = scmp.eq.s32.totalorder %s12, 0
      %p53 = por %p51, %p52
      %p54 = scmp.ne.s32.totalorder %s46, %s48
      %p55 = scmp.eq.s32.totalorder %s17, 7
      %p56 = por %p54, %p55
      %p57 = scmp.ne.s32.totalorder %s48, %s49
      %p58 = scmp.eq.s32.totalorder %s17, 0
      %p59 = por %p57, %p58
      %p60 = scmp.ne.s32.totalorder %s48, %s49
      %p61 = scmp.eq.s32.totalorder %s18, 7
      %p62 = por %p60, %p61
      %p64 = scmp.ne.s32.totalorder %s49, %s63
      %p65 = scmp.eq.s32.totalorder %s18, 0
      %p66 = por %p64, %p65
      %s68 = sadd.s32 %s67, 1
      %p71 = scmp.eq.s32.totalorder %s12, 7
      %p72 = scmp.ne.s32.totalorder %s67, %s69
      %p73 = scmp.eq.s32.totalorder %s12, 0
      %p74 = por %p72, %p73
      %p75 = scmp.ne.s32.totalorder %s67, %s69
      %p76 = scmp.eq.s32.totalorder %s17, 7
      %p77 = por %p75, %p76
      %p78 = scmp.ne.s32.totalorder %s69, %s70
      %p79 = scmp.eq.s32.totalorder %s17, 0
      %p80 = por %p78, %p79
      %p81 = scmp.ne.s32.totalorder %s69, %s70
      %p82 = scmp.eq.s32.totalorder %s18, 7
      %p83 = por %p81, %p82
      %p85 = scmp.ne.s32.totalorder %s70, %s84
      %p86 = scmp.eq.s32.totalorder %s18, 0
      %p87 = por %p85, %p86
      %s88 = ssub.s32 %s12, %s19
      %p89 = scmp.eq.s32.totalorder %s88, 0
      %s91 = sadd.s32 %s90, 1
      %s92 = scalar_select %p89, %s90, %s91
      %p95 = pneg %p89
      %p96 = scmp.eq.s32.totalorder %s12, 7
      %p97 = por %p95, %p96
      %p98 = scmp.ne.s32.totalorder %s90, %s93
      %p99 = scmp.eq.s32.totalorder %s12, 0
      %p100 = por %p98, %p99
      %p101 = scmp.ne.s32.totalorder %s90, %s93
      %p102 = scmp.eq.s32.totalorder %s17, 7
      %p103 = por %p101, %p102
      %p104 = scmp.ne.s32.totalorder %s93, %s94
      %p105 = scmp.eq.s32.totalorder %s17, 0
      %p106 = por %p104, %p105
      %p107 = scmp.ne.s32.totalorder %s93, %s94
      %p108 = scmp.eq.s32.totalorder %s18, 7
      %p109 = por %p107, %p108
      %p111 = scmp.ne.s32.totalorder %s94, %s110
      %p112 = scmp.eq.s32.totalorder %s18, 0
      %p113 = por %p111, %p112
      %p114 = scmp.le.s32.totalorder 1, %s12
      %p115 = scmp.lt.s32.totalorder %s12, 9
      %p116 = pnand %p114, %p115
      %p117 = pneg %p116
      // Predicated region
      $region9: #{tpu_custom_call.1} parent=5 // pred_check
        _
      $region10: #{tpu_custom_call.1} parent=5 // pred_check_branch
        %119 = sbr.rel (%p116) target = $region12
      $region11: #{tpu_custom_call.1} parent=5 // pred_region
        %s120 = ssub.s32 %s12, 1
        // Predicated region
        $region13: #{tpu_custom_call.1} parent=11 // pred_check
          %p121 = pneg %p59
        $region14: #{tpu_custom_call.1} parent=11 // pred_check_branch
          %123 = sbr.rel (%p121) target = $region16
        $region15: #{tpu_custom_call.1} parent=11 // pred_region
          _
        $region16: #{tpu_custom_call.1} parent=11 // pred_fallthru
          _
        // Predicated region
        $region17: #{tpu_custom_call.1} parent=11 // pred_check
          %p124 = pneg %p80
        $region18: #{tpu_custom_call.1} parent=11 // pred_check_branch
          %126 = sbr.rel (%p124) target = $region20
        $region19: #{tpu_custom_call.1} parent=11 // pred_region
          _
        $region20: #{tpu_custom_call.1} parent=11 // pred_fallthru
          _
      $region12: #{tpu_custom_call.1} parent=5 // pred_fallthru
        _
      %p127 = scmp.lt.s32.totalorder %s12, 8
      // Predicated region
      $region21: #{tpu_custom_call.1} parent=5 // pred_check
        %p128 = pneg %p127
      $region22: #{tpu_custom_call.1} parent=5 // pred_check_branch
        %130 = sbr.rel (%p128) target = $region24
      $region23: #{tpu_custom_call.1} parent=5 // pred_region
        // Predicated region
        $region25: #{tpu_custom_call.1} parent=23 // pred_check
          %p131 = pneg %p32
        $region26: #{tpu_custom_call.1} parent=23 // pred_check_branch
          %133 = sbr.rel (%p131) target = $region28
        $region27: #{tpu_custom_call.1} parent=23 // pred_region
          %s134 = smul.u32 4, %s12
          %p135 = scmp.lt.s32.totalorder %s134, 31
          %s136 = scalar_select %p135, %s134, 31
          %s137 = smul.addr %s136, 8
          %s138 = scalar_lea.vmem %s0, %s137
          %s139 = smul.u32 4, %s12
        $region28: #{tpu_custom_call.1} parent=23 // pred_fallthru
          _
      $region24: #{tpu_custom_call.1} parent=5 // pred_fallthru
        _
      %p140 = scmp.le.s32.totalorder 1, %s12
      %p141 = scmp.lt.s32.totalorder %s12, 9
      %p142 = pnand %p140, %p141
      %p143 = pneg %p142
      // Predicated region
      $region29: #{tpu_custom_call.1} parent=5 // pred_check
        _
      $region30: #{tpu_custom_call.1} parent=5 // pred_check_branch
        %145 = sbr.rel (%p142) target = $region32
      $region31: #{tpu_custom_call.1} parent=5 // pred_region
        %s146 = ssub.s32 %s12, 1
        %s147 = smul.u32 4, %s17
        %p148 = scmp.lt.s32.totalorder %s147, 31
        %s149 = scalar_select %p148, %s147, 31
        %s150 = smul.addr %s149, 8
        %s151 = scalar_lea.vmem %s0, %s150
        %p152 = pneg %p38
        %p153 = pneg %p35
        %p154 = pneg %p59
        %p155 = pneg %p56
        %p156 = pneg %p80
        %p157 = pneg %p77
        %p158 = pneg %p106
        %p159 = pneg %p103
        %s160 = sand.u32 %s93, 1
        %s161 = scalar_lea.sflag [#allocation3], %s160
        %s162 = sand.u32 %s93, 1
        %s163 = smul.addr %s162, 32
        %s164 = scalar_lea.vmem [#allocation2], %s163
        %s165 = smul.u32 4, %s17
        %p166 = scmp.lt.s32.totalorder %s165, 31
        %s167 = scalar_select %p166, %s165, 31
        %s168 = smul.addr %s167, 8
        %s169 = scalar_lea.vmem %s0, %s168
        %s170 = smul.u32 4, %s17
        %s171 = smul.u32 4, %s17
        %v173 = vld [vmem:[%s169] sm:$0xff]
        %v174 = vld [vmem:[%s169 + $0x8] sm:$0xff]
        %v175 = vld [vmem:[%s169 + $0x10] sm:$0xff]
        %v176 = vld [vmem:[%s169 + $0x18] sm:$0xff]
        %v177 = vpack.c.bf16 %v174, %v173
        %v178 = vpack.c.bf16 %v176, %v175
        %v179 = vld [vmem:[%s1] sm:$0xf]
        %v180 = vld [vmem:[%s1 + $0x4] sm:$0xf]
        %v181 = vld [vmem:[%s1 + $0x8] sm:$0xf]
        %v182 = vld [vmem:[%s1 + $0xc] sm:$0xf]
        %v183 = vld [vmem:[%s2] sm:$0x1]
        %v185 = vlaneseq
        %v186 = vshrl.u32 %v185, 7
        %v187 = vsub.s32 0, %v186
        %v188 = vrot.slane %v183, %v187
        %v194 = vunpack.c.l.b16 %v179
        %v195 = vunpack.c.l.b16 %v180
        %v196 = vunpack.c.l.b16 %v181
        %v197 = vunpack.c.l.b16 %v182
        %v198 = vpack.c.b16 %v195, %v194
        %v199 = vpack.c.b16 %v197, %v196
        %vm202 = vcmask 261120
        %v204 = vsel %vm202, %v177, 0
        %v207 = vsel %vm202, %v178, 0
        %209 = vmatprep.subr.bf16.mxu0 0
        %210 = vmatpush1.bf16.msra.mxu0 %v198
        %211 = vmatprep.subr.bf16.mxu0 0
        %212 = vmatpush1.bf16.msra.mxu0 %v199
        %213 = vmatprep.subr.bf16.mxu0 0
        %214 = vmatpush1.bf16.msra.mxu0 0
        %215 = vmatprep.subr.bf16.mxu0 0
        %216 = vmatpush1.bf16.msra.mxu0 0
        %217 = vmatprep.subr.bf16.mxu0 0
        %218 = vmatpush1.bf16.msra.mxu0 0
        %219 = vmatprep.subr.bf16.mxu0 0
        %220 = vmatpush1.bf16.msra.mxu0 0
        %221 = vmatprep.subr.bf16.mxu0 0
        %222 = vmatpush1.bf16.msra.mxu0 0
        %223 = vmatprep.subr.bf16.mxu0 0
        %224 = vmatpush1.bf16.msra.mxu0 0
        %225 = vmatprep.subr.bf16.mxu0 0
        %226 = vmatpush1.bf16.msra.mxu0 0
        %227 = vmatprep.subr.bf16.mxu0 0
        %228 = vmatpush1.bf16.msra.mxu0 0
        %229 = vmatprep.subr.bf16.mxu0 0
        %230 = vmatpush1.bf16.msra.mxu0 0
        %231 = vmatprep.subr.bf16.mxu0 0
        %232 = vmatpush1.bf16.msra.mxu0 0
        %233 = vmatprep.subr.bf16.mxu0 0
        %234 = vmatpush1.bf16.msra.mxu0 0
        %235 = vmatprep.subr.bf16.mxu0 0
        %236 = vmatpush1.bf16.msra.mxu0 0
        %237 = vmatprep.subr.bf16.mxu0 0
        %238 = vmatpush1.bf16.msra.mxu0 0
        %239 = vmatprep.subr.bf16.mxu0 0
        %240 = vmatpush1.bf16.msra.mxu0 0
        %241 = vmatprep.mubr.bf16.mxu0 0
        %242 = vmatmul.mubr.bf16.gmra.mrb[0].mxu0 %v204
        %v243 = vpop.f32.mrb[0].mxu0
        %v244 = vadd.f32 %v188, %v243
        %v245 = vpop.f32.mrb[0].mxu0
        %v246 = vpop.f32.mrb[0].mxu0
        %v247 = vadd.f32 %v188, %v246
        %v248 = vpop.f32.mrb[0].mxu0
        %249 = vmatprep.mubr.bf16.mxu0 0
        %250 = vmatmul.mubr.bf16.gmra.mrb[0].mxu0 %v207
        %v251 = vpop.f32.mrb[0].mxu0
        %v252 = vadd.f32 %v188, %v251
        %v253 = vpop.f32.mrb[0].mxu0
        %v254 = vpop.f32.mrb[0].mxu0
        %v255 = vadd.f32 %v188, %v254
        %v256 = vpop.f32.mrb[0].mxu0
        %257 = vdwg.mxu0
        %vm258 = vcmp.gt.f32.partialorder %v244, 0.0
        %vm259 = vcmp.gt.f32.partialorder %v247, 0.0
        %vm260 = vcmp.gt.f32.partialorder %v252, 0.0
        %vm261 = vcmp.gt.f32.partialorder %v255, 0.0
        %v262 = vmul.f32 %v244, 1.442695
        %v263 = vpow.pop %v262
        %v264 = vmul.f32 %v247, 1.442695
        %v265 = vpow.pop %v264
        %v266 = vmul.f32 %v252, 1.442695
        %v267 = vpow.pop %v266
        %v268 = vmul.f32 %v255, 1.442695
        %v269 = vpow.pop %v268
        %v270 = vsub.f32 %v263, 1.0
        %v271 = vsub.f32 %v265, 1.0
        %v272 = vsub.f32 %v267, 1.0
        %v273 = vsub.f32 %v269, 1.0
        %v274 = vsel %vm258, %v244, %v270
        %v275 = vsel %vm259, %v247, %v271
        %v276 = vsel %vm260, %v252, %v272
        %v277 = vsel %vm261, %v255, %v273
        %v278 = vmul.f32 %v274, 1.442695
        %v279 = vpow.pop %v278
        %v280 = vmul.f32 %v275, 1.442695
        %v281 = vpow.pop %v280
        %v282 = vmul.f32 %v276, 1.442695
        %v283 = vpow.pop %v282
        %v284 = vmul.f32 %v277, 1.442695
        %v285 = vpow.pop %v284
        %v286 = vadd.f32 %v279, 1.0
        %v287 = vadd.f32 %v281, 1.0
        %v288 = vadd.f32 %v283, 1.0
        %v289 = vadd.f32 %v285, 1.0
        %v290 = vlaneseq
        %v291 = vand.u32 %v290, 127
        %vm292 = vcmp.lt.s32.totalorder %v291, 8
        %v293 = vsel %vm292, %v286, 0.0
        %v294 = vsel %vm292, %v287, 0.0
        %v295 = vsel %vm292, %v288, 0.0
        %v296 = vsel %vm292, %v289, 0.0
        %297 = vadd.xlane.f32.xlu0 %v293
        %v298 = vpop.xlane.xlu0 %297
        %299 = vadd.xlane.f32.xlu0 %v294
        %v300 = vpop.xlane.xlu0 %299
        %301 = vadd.xlane.f32.xlu0 %v295
        %v302 = vpop.xlane.xlu0 %301
        %303 = vadd.xlane.f32.xlu0 %v296
        %v304 = vpop.xlane.xlu0 %303
        %v305 = vrcp.pop %v298
        %v306 = vrcp.pop %v300
        %v307 = vrcp.pop %v302
        %v308 = vrcp.pop %v304
        %v309 = vmul.f32 %v293, %v305
        %v310 = vmul.f32 %v294, %v306
        %v311 = vmul.f32 %v295, %v307
        %v312 = vmul.f32 %v296, %v308
        %vm313 = vcmp.lt.s32.totalorder %v291, 64
        %314 = vrot.lane.b32.xlu0 %v309, 64
        %v315 = vpop.permute.xlu0 %314
        %316 = vrot.lane.b32.xlu0 %v310, 64
        %v317 = vpop.permute.xlu0 %316
        %318 = vrot.lane.b32.xlu0 %v311, 64
        %v319 = vpop.permute.xlu0 %318
        %320 = vrot.lane.b32.xlu0 %v312, 64
        %v321 = vpop.permute.xlu0 %320
        %v322 = vsel %vm313, %v279, %v315
        %v323 = vsel %vm313, %v281, %v317
        %v324 = vsel %vm313, %v283, %v319
        %v325 = vsel %vm313, %v285, %v321
        %326 = vst [vmem:[%s164] sm:$0xff] %v322
        %327 = vst [vmem:[%s164 + $0x8] sm:$0xff] %v323
        %328 = vst [vmem:[%s164 + $0x10] sm:$0xff] %v324
        %329 = vst [vmem:[%s164 + $0x18] sm:$0xff] %v325
        %s330 = sand.u32 %s93, 1
        %s331 = scalar_lea.sflag [#allocation3], %s330
        %s332 = sand.u32 %s93, 1
        %s333 = smul.addr %s332, 32
        %s334 = scalar_lea.vmem [#allocation2], %s333
        // Predicated region
        $region33: #{tpu_custom_call.1} parent=31 // pred_check
          %p335 = pneg %p103
        $region34: #{tpu_custom_call.1} parent=31 // pred_check_branch
          %337 = sbr.rel (%p335) target = $region36
        $region35: #{tpu_custom_call.1} parent=31 // pred_region
          %s338 = smul.u32 4, %s17
          %s340 = ssub.s32 512, 512
          %341 = vsyncadd %s331, %s340
          %s342 = smul.addr %s338, 128
          %s343 = scalar_lea.hbm %s3, %s342
          %s344 = sshll.u32 %s334, 4
          %s345 = int_to_ptr.vmem [resolvable:$true] %s344
          %350 = dma.vmem_to_hbm [thread:$0]  %s345, 512, %s343, %s331, 128, 128, 8
        $region36: #{tpu_custom_call.1} parent=31 // pred_fallthru
          _
      $region32: #{tpu_custom_call.1} parent=5 // pred_fallthru
        _
      %p351 = scmp.le.s32.totalorder 2, %s12
      // Predicated region
      $region37: #{tpu_custom_call.1} parent=5 // pred_check
        %p352 = pneg %p351
      $region38: #{tpu_custom_call.1} parent=5 // pred_check_branch
        %354 = sbr.rel (%p352) target = $region40
      $region39: #{tpu_custom_call.1} parent=5 // pred_region
        %s355 = ssub.s32 %s12, 2
        // Predicated region
        $region41: #{tpu_custom_call.1} parent=39 // pred_check
          %p356 = pneg %p109
        $region42: #{tpu_custom_call.1} parent=39 // pred_check_branch
          %358 = sbr.rel (%p356) target = $region44
        $region43: #{tpu_custom_call.1} parent=39 // pred_region
          %s359 = sand.u32 %s94, 1
          %s360 = scalar_lea.sflag [#allocation3], %s359
          %s361 = sand.u32 %s94, 1
          %s362 = smul.addr %s361, 32
          %s363 = scalar_lea.vmem [#allocation2], %s362
          %364 = dma.done %s360, 512
        $region44: #{tpu_custom_call.1} parent=39 // pred_fallthru
          _
      $region40: #{tpu_custom_call.1} parent=5 // pred_fallthru
        _
    $region6: #{tpu_custom_call.1} parent=1 // loop_footer
      %s16 = sadd.s32 1, %s12
    $region7: #{tpu_custom_call.1} parent=1 // loop_footer_branch
      %11 = sbr.rel target = $region3
    $region8: #{tpu_custom_call.1} parent=1 // loop_exit
      _
    %365 = vsyncpa [#allocation3], 1
    %s366 = scalar_lea.sflag [#allocation3], 1
    %367 = vsyncpa %s366, 1

</llo_original>
